<compile_context>
chip_gen: v6e
topology: v6e:2x2x1
jax: 0.10.0
libtpu: 0.0.40
codegen_flags: <defaults>
</compile_context>

<pallas_src>
import functools

import jax
import jax.numpy as jnp
from jax.experimental import pallas as pl
from jax.experimental.pallas import tpu as pltpu

IN_F = 3        # input features (pressure vector)
HID = 64        # logical hidden width
OUT_F = 3       # output features (theta) -- kept narrow all the way to HBM
HID_PAD = 128   # hidden width zero-padded to full lane width


def _round_up(n, m):
    return ((n + m - 1) // m) * m


def mlp_kernel(x_ref, w1_ref, b1_ref, w2_ref, b2_ref, w3_ref, b3_ref, o_ref):
    x = x_ref[...]                                   # (TB, 3)   f32
    w1 = w1_ref[...]                                 # (3, 128)  f32

    # Layer 1: K=3 matmul replaced by 3 VPU broadcast-FMAs (an MXU pass would
    # use 3 of 128/256 systolic rows and still pay push/pop latency).
    h1 = (x[:, 0:1] * w1[0:1, :]
          + x[:, 1:2] * w1[1:2, :]
          + x[:, 2:3] * w1[2:3, :]
          + b1_ref[...])                             # (TB, 128) f32
    h1 = jnp.maximum(h1, 0.0)

    # Layer 2: bf16 MXU operands (native MXU dtype on v5e/v6e/v7x), f32
    # accumulation; bias + ReLU stay f32 on the VPU.
    h2 = jnp.dot(h1.astype(jnp.bfloat16), w2_ref[...],
                 preferred_element_type=jnp.float32)
    h2 = jnp.maximum(h2 + b2_ref[...], 0.0)          # (TB, 128) f32

    # Layer 3: produces the true 3-wide output directly; the HBM store only
    # moves 12 B/row instead of a 512 B padded slab.
    y = jnp.dot(h2.astype(jnp.bfloat16), w3_ref[...],
                preferred_element_type=jnp.float32)  # (TB, 3) f32
    o_ref[...] = (y + b3_ref[...]).astype(o_ref.dtype)


@functools.partial(jax.jit, static_argnames=("block_rows",))
def mlp_forward(x, padded_params, *, block_rows=2048):
    """x: (B, 3) f32.  padded_params: lane-padded/bf16 weights from pad_params()."""
    w1, b1, w2, b2, w3, b3 = padded_params
    B, F = x.shape
    assert F == IN_F

    # Batch tile: multiple of 8 sublanes, floor of 128 rows (so per-step
    # overhead stays small), capped so large batches get >=8 grid steps
    # (pipelining; 2-TC sharding on v7x), and never larger than block_rows.
    b8 = _round_up(B, 8)
    tb = min(block_rows, b8, max(128, _round_up(pl.cdiv(b8, 8), 8)))
    b_pad = _round_up(B, tb)
    x_in = x if b_pad == B else jnp.pad(x, ((0, b_pad - B), (0, 0)))
    grid = (b_pad // tb,)

    const = lambda i: (0, 0)  # weights/biases: same block every step -> one DMA
    flops = 2 * b_pad * (IN_F * HID_PAD + HID_PAD * HID_PAD + HID_PAD * OUT_F)
    bytes_accessed = (
        4 * b_pad * (IN_F + OUT_F)                           # x read + y write
        + 4 * (IN_F * HID_PAD + HID_PAD + HID_PAD + OUT_F)   # w1, b1, b2, b3 (f32)
        + 2 * (HID_PAD * HID_PAD + HID_PAD * OUT_F))         # w2, w3 (bf16)

    out = pl.pallas_call(
        mlp_kernel,
        out_shape=jax.ShapeDtypeStruct((b_pad, OUT_F), jnp.float32),
        grid=grid,
        in_specs=[
            pl.BlockSpec((tb, IN_F), lambda i: (i, 0)),      # x block
            pl.BlockSpec((IN_F, HID_PAD), const),            # w1  f32
            pl.BlockSpec((1, HID_PAD), const),               # b1  f32
            pl.BlockSpec((HID_PAD, HID_PAD), const),         # w2  bf16
            pl.BlockSpec((1, HID_PAD), const),               # b2  f32
            pl.BlockSpec((HID_PAD, OUT_F), const),           # w3  bf16 (narrow)
            pl.BlockSpec((1, OUT_F), const),                 # b3  f32  (narrow)
        ],
        out_specs=pl.BlockSpec((tb, OUT_F), lambda i: (i, 0)),
        compiler_params=pltpu.CompilerParams(
            dimension_semantics=("parallel",)),              # shard grid on v7x
        cost_estimate=pl.CostEstimate(
            flops=flops, transcendentals=0, bytes_accessed=bytes_accessed),
    )(x_in, w1, b1, w2, b2, w3, b3)

    return out if b_pad == B else out[:B]


def init_params(key):
    """PyTorch-default Linear init (uniform(-1/sqrt(fan_in), 1/sqrt(fan_in))).
    Weights are stored transposed as (in_features, out_features) so forward is
    x @ W + b; biases are (1, out_features)."""
    def linear(key, fan_in, fan_out):
        kw, kb = jax.random.split(key)
        bound = 1.0 / jnp.sqrt(fan_in)
        w = jax.random.uniform(kw, (fan_in, fan_out), jnp.float32, -bound, bound)
        b = jax.random.uniform(kb, (1, fan_out), jnp.float32, -bound, bound)
        return w, b

    k1, k2, k3 = jax.random.split(key, 3)
    w1, b1 = linear(k1, IN_F, HID)
    w2, b2 = linear(k2, HID, HID)
    w3, b3 = linear(k3, HID, OUT_F)
    return w1, b1, w2, b2, w3, b3


def pad_params(params):
    """Zero-pad the hidden dim to 128 lanes (exact: ReLU(0+0)=0 contributes
    nothing downstream) and cast the MXU weights w2/w3 to bf16.  The output
    dim of w3/b3 stays at 3 so the kernel produces a narrow output."""
    w1, b1, w2, b2, w3, b3 = params
    w1p = jnp.pad(w1, ((0, 0), (0, HID_PAD - HID)))                        # f32 (3,128)
    b1p = jnp.pad(b1, ((0, 0), (0, HID_PAD - HID)))                        # f32 (1,128)
    w2p = jnp.pad(w2, ((0, HID_PAD - HID), (0, HID_PAD - HID))).astype(jnp.bfloat16)
    b2p = jnp.pad(b2, ((0, 0), (0, HID_PAD - HID)))                        # f32 (1,128)
    w3p = jnp.pad(w3, ((0, HID_PAD - HID), (0, 0))).astype(jnp.bfloat16)   # bf16 (128,3)
    b3p = b3                                                               # f32 (1,3)
    return w1p, b1p, w2p, b2p, w3p, b3p


def reference_forward(x, params):
    w1, b1, w2, b2, w3, b3 = params
    h1 = jnp.maximum(x @ w1 + b1, 0.0)
    h2 = jnp.maximum(h1 @ w2 + b2, 0.0)
    return h2 @ w3 + b3


if __name__ == "__main__":
    key = jax.random.PRNGKey(0)
    kx, kp = jax.random.split(key)

    B = 10  # small batch of pressure vectors (also exercises the tail-pad path)
    x = jax.random.normal(kx, (B, IN_F), jnp.float32)
    params = init_params(kp)
    padded = pad_params(params)

    y = mlp_forward(x, padded)
    jax.block_until_ready(y)

    y_ref = reference_forward(x, params)
    assert y.shape == (B, OUT_F)
    assert bool(jnp.all(jnp.isfinite(y)))
    # Tolerance loosened vs. pure-f32: layers 2/3 use bf16 MXU operands
    # (f32 accumulation), giving ~1e-3 .. 1e-2 level deviations.
    err = jnp.max(jnp.abs(y - y_ref))
    assert jnp.allclose(y, y_ref, atol=3e-2, rtol=3e-2), f"max abs err {err}"

    print("KERNEL_OK")
</pallas_src>

<mosaic_0001>
module attributes {stable_mosaic.version = 11 : i64} {
  func.func @mlp_kernel(%arg0: i32, %arg1: memref<16x3xf32, #tpu.memory_space<vmem>>, %arg2: memref<3x128xf32, #tpu.memory_space<vmem>>, %arg3: memref<1x128xf32, #tpu.memory_space<vmem>>, %arg4: memref<128x128xbf16, #tpu.memory_space<vmem>>, %arg5: memref<1x128xf32, #tpu.memory_space<vmem>>, %arg6: memref<128x3xbf16, #tpu.memory_space<vmem>>, %arg7: memref<1x3xf32, #tpu.memory_space<vmem>>, %arg8: memref<16x3xf32, #tpu.memory_space<vmem>>) attributes {dimension_semantics = [#tpu.dimension_semantics<parallel>], iteration_bounds = array<i64: 1>, scalar_prefetch = 0 : i64, scratch_operands = 0 : i64, tpu.core_type = #tpu.core_type<tc>, window_params = [{transform_indices = @transform_0, window_bounds = array<i64: 16, 3>}, {pipeline_mode = #tpu.pipeline_mode<synchronous>, transform_indices = @transform_1, window_bounds = array<i64: 3, 128>}, {pipeline_mode = #tpu.pipeline_mode<synchronous>, transform_indices = @transform_2, window_bounds = array<i64: 1, 128>}, {pipeline_mode = #tpu.pipeline_mode<synchronous>, transform_indices = @transform_3, window_bounds = array<i64: 128, 128>}, {pipeline_mode = #tpu.pipeline_mode<synchronous>, transform_indices = @transform_4, window_bounds = array<i64: 1, 128>}, {pipeline_mode = #tpu.pipeline_mode<synchronous>, transform_indices = @transform_5, window_bounds = array<i64: 128, 3>}, {pipeline_mode = #tpu.pipeline_mode<synchronous>, transform_indices = @transform_6, window_bounds = array<i64: 1, 3>}, {transform_indices = @transform_7, window_bounds = array<i64: 16, 3>}]} {
    %c0 = arith.constant 0 : index
    %c0_0 = arith.constant 0 : index
    %0 = vector.load %arg1[%c0, %c0_0] : memref<16x3xf32, #tpu.memory_space<vmem>>, vector<16x3xf32>
    %c0_1 = arith.constant 0 : index
    %c0_2 = arith.constant 0 : index
    %1 = vector.load %arg2[%c0_1, %c0_2] : memref<3x128xf32, #tpu.memory_space<vmem>>, vector<3x128xf32>
    %2 = vector.extract_strided_slice %0 {offsets = [0, 0], sizes = [16, 1], strides = [1, 1]} : vector<16x3xf32> to vector<16x1xf32>
    %3 = vector.extract_strided_slice %1 {offsets = [0, 0], sizes = [1, 128], strides = [1, 1]} : vector<3x128xf32> to vector<1x128xf32>
    %4 = vector.broadcast %2 : vector<16x1xf32> to vector<16x128xf32>
    %5 = vector.broadcast %3 : vector<1x128xf32> to vector<16x128xf32>
    %6 = arith.mulf %4, %5 : vector<16x128xf32>
    %7 = vector.extract_strided_slice %0 {offsets = [0, 1], sizes = [16, 1], strides = [1, 1]} : vector<16x3xf32> to vector<16x1xf32>
    %8 = vector.extract_strided_slice %1 {offsets = [1, 0], sizes = [1, 128], strides = [1, 1]} : vector<3x128xf32> to vector<1x128xf32>
    %9 = vector.broadcast %7 : vector<16x1xf32> to vector<16x128xf32>
    %10 = vector.broadcast %8 : vector<1x128xf32> to vector<16x128xf32>
    %11 = arith.mulf %9, %10 : vector<16x128xf32>
    %12 = arith.addf %6, %11 : vector<16x128xf32>
    %13 = vector.extract_strided_slice %0 {offsets = [0, 2], sizes = [16, 1], strides = [1, 1]} : vector<16x3xf32> to vector<16x1xf32>
    %14 = vector.extract_strided_slice %1 {offsets = [2, 0], sizes = [1, 128], strides = [1, 1]} : vector<3x128xf32> to vector<1x128xf32>
    %15 = vector.broadcast %13 : vector<16x1xf32> to vector<16x128xf32>
    %16 = vector.broadcast %14 : vector<1x128xf32> to vector<16x128xf32>
    %17 = arith.mulf %15, %16 : vector<16x128xf32>
    %18 = arith.addf %12, %17 : vector<16x128xf32>
    %c0_3 = arith.constant 0 : index
    %c0_4 = arith.constant 0 : index
    %19 = vector.load %arg3[%c0_3, %c0_4] : memref<1x128xf32, #tpu.memory_space<vmem>>, vector<1x128xf32>
    %20 = vector.broadcast %19 : vector<1x128xf32> to vector<16x128xf32>
    %21 = arith.addf %18, %20 : vector<16x128xf32>
    %cst = arith.constant 0.000000e+00 : f32
    %22 = vector.broadcast %cst : f32 to vector<16x128xf32>
    %23 = arith.maximumf %21, %22 : vector<16x128xf32>
    %24 = arith.truncf %23 : vector<16x128xf32> to vector<16x128xbf16>
    %c0_5 = arith.constant 0 : index
    %c0_6 = arith.constant 0 : index
    %25 = vector.load %arg4[%c0_5, %c0_6] : memref<128x128xbf16, #tpu.memory_space<vmem>>, vector<128x128xbf16>
    %cst_7 = arith.constant dense<0.000000e+00> : vector<16x128xf32>
    %26 = tpu.matmul %24, %25, %cst_7 {dimension_numbers = #tpu.dot_dimension_numbers<[1], [0], [0], [1], [0, 0, 1, 1], [], []>} : vector<16x128xbf16>, vector<128x128xbf16>, vector<16x128xf32> -> vector<16x128xf32>
    %c0_8 = arith.constant 0 : index
    %c0_9 = arith.constant 0 : index
    %27 = vector.load %arg5[%c0_8, %c0_9] : memref<1x128xf32, #tpu.memory_space<vmem>>, vector<1x128xf32>
    %28 = vector.broadcast %27 : vector<1x128xf32> to vector<16x128xf32>
    %29 = arith.addf %26, %28 : vector<16x128xf32>
    %cst_10 = arith.constant 0.000000e+00 : f32
    %30 = vector.broadcast %cst_10 : f32 to vector<16x128xf32>
    %31 = arith.maximumf %29, %30 : vector<16x128xf32>
    %32 = arith.truncf %31 : vector<16x128xf32> to vector<16x128xbf16>
    %c0_11 = arith.constant 0 : index
    %c0_12 = arith.constant 0 : index
    %33 = vector.load %arg6[%c0_11, %c0_12] : memref<128x3xbf16, #tpu.memory_space<vmem>>, vector<128x3xbf16>
    %cst_13 = arith.constant dense<0.000000e+00> : vector<16x3xf32>
    %34 = tpu.matmul %32, %33, %cst_13 {dimension_numbers = #tpu.dot_dimension_numbers<[1], [0], [0], [1], [0, 0, 1, 1], [], []>} : vector<16x128xbf16>, vector<128x3xbf16>, vector<16x3xf32> -> vector<16x3xf32>
    %c0_14 = arith.constant 0 : index
    %c0_15 = arith.constant 0 : index
    %35 = vector.load %arg7[%c0_14, %c0_15] : memref<1x3xf32, #tpu.memory_space<vmem>>, vector<1x3xf32>
    %36 = vector.broadcast %35 : vector<1x3xf32> to vector<16x3xf32>
    %37 = arith.addf %34, %36 : vector<16x3xf32>
    %c0_16 = arith.constant 0 : index
    %c0_17 = arith.constant 0 : index
    %38 = vector.load %arg8[%c0_16, %c0_17] : memref<16x3xf32, #tpu.memory_space<vmem>>, vector<16x3xf32>
    tpu.vector_store %arg8[%c0_16, %c0_17], %37 {strides = array<i32>} : memref<16x3xf32, #tpu.memory_space<vmem>>, vector<16x3xf32>,
    return
  }
  func.func @transform_0(%arg0: i32) -> (i32, i32) {
    %c0_i32 = arith.constant 0 : i32
    %c0_i32_0 = arith.constant 0 : i32
    return %arg0, %c0_i32 : i32, i32
  }
  func.func @transform_1(%arg0: i32) -> (i32, i32) {
    %c0_i32 = arith.constant 0 : i32
    %c0_i32_0 = arith.constant 0 : i32
    %c0_i32_1 = arith.constant 0 : i32
    return %c0_i32, %c0_i32_0 : i32, i32
  }
  func.func @transform_2(%arg0: i32) -> (i32, i32) {
    %c0_i32 = arith.constant 0 : i32
    %c0_i32_0 = arith.constant 0 : i32
    %c0_i32_1 = arith.constant 0 : i32
    return %c0_i32, %c0_i32_0 : i32, i32
  }
  func.func @transform_3(%arg0: i32) -> (i32, i32) {
    %c0_i32 = arith.constant 0 : i32
    %c0_i32_0 = arith.constant 0 : i32
    %c0_i32_1 = arith.constant 0 : i32
    return %c0_i32, %c0_i32_0 : i32, i32
  }
  func.func @transform_4(%arg0: i32) -> (i32, i32) {
    %c0_i32 = arith.constant 0 : i32
    %c0_i32_0 = arith.constant 0 : i32
    %c0_i32_1 = arith.constant 0 : i32
    return %c0_i32, %c0_i32_0 : i32, i32
  }
  func.func @transform_5(%arg0: i32) -> (i32, i32) {
    %c0_i32 = arith.constant 0 : i32
    %c0_i32_0 = arith.constant 0 : i32
    %c0_i32_1 = arith.constant 0 : i32
    return %c0_i32, %c0_i32_0 : i32, i32
  }
  func.func @transform_6(%arg0: i32) -> (i32, i32) {
    %c0_i32 = arith.constant 0 : i32
    %c0_i32_0 = arith.constant 0 : i32
    %c0_i32_1 = arith.constant 0 : i32
    return %c0_i32, %c0_i32_0 : i32, i32
  }
  func.func @transform_7(%arg0: i32) -> (i32, i32) {
    %c0_i32 = arith.constant 0 : i32
    %c0_i32_0 = arith.constant 0 : i32
    return %arg0, %c0_i32 : i32, i32
  }
}

</mosaic_0001>

<llo_original>
// kernel: mlp_forward.1
$region0: #{mlp_forward.1}
  #allocation0 [shape = 'u32[]', space=smem, size = 0x4, offset = 0x4, fixed_abs, tag = 'smem constant byte address 0x4 - core index']
  #allocation1 [shape = 'u32[144,128]{1,0:T(1,128)}', space=vmem, size = 0x12000, scoped, tag = 'internal scratch']
  %s0 = inlined_call_operand.vmem [shape: f32[16,3], index: 0, kind: input, shape index: {}]
  %s1 = inlined_call_operand.vmem [shape: f32[3,128], index: 1, kind: input, shape index: {}]
  %s2 = inlined_call_operand.vmem [shape: f32[1,128], index: 2, kind: input, shape index: {}]
  %s3 = inlined_call_operand.vmem [shape: bf16[128,128], index: 3, kind: input, shape index: {}]
  %s4 = inlined_call_operand.vmem [shape: f32[1,128], index: 4, kind: input, shape index: {}]
  %s5 = inlined_call_operand.vmem [shape: bf16[128,3], index: 5, kind: input, shape index: {}]
  %s6 = inlined_call_operand.vmem [shape: f32[1,3], index: 6, kind: input, shape index: {}]
  %s7 = inlined_call_operand.vmem [shape: f32[16,3], index: 7, kind: output, shape index: {}]
  %s8 = sld [smem:[#allocation0]]
  $region38: #{mlp_forward.1} parent=0
    _
  %s10 = ssub.s32 1, %s8
  %s11 = scalar_select 0, %s10, %s8
  // Predicated region
  $region2: #{mlp_forward.1} parent=0 // pred_check
    _
  $region3: #{mlp_forward.1} parent=0 // pred_check_branch
    %13 = sbr.rel (0) target = $region5
  $region4: #{mlp_forward.1} parent=0 // pred_region
    _
  $region5: #{mlp_forward.1} parent=0 // pred_fallthru
    _
  // Predicated region
  $region6: #{mlp_forward.1} parent=0 // pred_check
    _
  $region7: #{mlp_forward.1} parent=0 // pred_check_branch
    %15 = sbr.rel (0) target = $region9
  $region8: #{mlp_forward.1} parent=0 // pred_region
    _
  $region9: #{mlp_forward.1} parent=0 // pred_fallthru
    _
  // Predicated region
  $region10: #{mlp_forward.1} parent=0 // pred_check
    _
  $region11: #{mlp_forward.1} parent=0 // pred_check_branch
    %17 = sbr.rel (0) target = $region13
  $region12: #{mlp_forward.1} parent=0 // pred_region
    _
  $region13: #{mlp_forward.1} parent=0 // pred_fallthru
    _
  // Predicated region
  $region14: #{mlp_forward.1} parent=0 // pred_check
    _
  $region15: #{mlp_forward.1} parent=0 // pred_check_branch
    %19 = sbr.rel (0) target = $region17
  $region16: #{mlp_forward.1} parent=0 // pred_region
    _
  $region17: #{mlp_forward.1} parent=0 // pred_fallthru
    _
  // Predicated region
  $region18: #{mlp_forward.1} parent=0 // pred_check
    _
  $region19: #{mlp_forward.1} parent=0 // pred_check_branch
    %21 = sbr.rel (0) target = $region21
  $region20: #{mlp_forward.1} parent=0 // pred_region
    _
  $region21: #{mlp_forward.1} parent=0 // pred_fallthru
    _
  // Predicated region
  $region22: #{mlp_forward.1} parent=0 // pred_check
    _
  $region23: #{mlp_forward.1} parent=0 // pred_check_branch
    %23 = sbr.rel (0) target = $region25
  $region24: #{mlp_forward.1} parent=0 // pred_region
    _
  $region25: #{mlp_forward.1} parent=0 // pred_fallthru
    _
  // Predicated region
  $region26: #{mlp_forward.1} parent=0 // pred_check
    _
  $region27: #{mlp_forward.1} parent=0 // pred_check_branch
    %25 = sbr.rel (0) target = $region29
  $region28: #{mlp_forward.1} parent=0 // pred_region
    _
  $region29: #{mlp_forward.1} parent=0 // pred_fallthru
    _
  %v27 = vld [vmem:[%s0] sm:$0xff]
  %v28 = vld [vmem:[%s0 + $0x8] sm:$0xff]
  %v29 = vld [vmem:[%s1] sm:$0x7]
  %31 = vset.pattern.permute.xlu0 0
  %32 = vperm.xlu0 %31, %v27
  %v33 = vpop.permute.xlu0 %32
  %36 = vset.pattern.permute.xlu0 0
  %37 = vperm.xlu0 %36, %v28
  %v38 = vpop.permute.xlu0 %37
  %v40 = vlaneseq
  %v41 = vshrl.u32 %v40, 7
  %v42 = vsub.s32 0, %v41
  %v43 = vrot.slane %v29, %v42
  %v44 = vmul.f32 %v33, %v43
  %v45 = vmul.f32 %v38, %v43
  %46 = vset.pattern.permute.xlu0 1
  %47 = vperm.xlu0 %46, %v27
  %v48 = vpop.permute.xlu0 %47
  %50 = vset.pattern.permute.xlu0 1
  %51 = vperm.xlu0 %50, %v28
  %v52 = vpop.permute.xlu0 %51
  %v54 = vlaneseq
  %v55 = vshrl.u32 %v54, 7
  %v56 = vsub.s32 1, %v55
  %v57 = vrot.slane %v29, %v56
  %v58 = vmul.f32 %v48, %v57
  %v59 = vmul.f32 %v52, %v57
  %v60 = vadd.f32 %v44, %v58
  %v61 = vadd.f32 %v45, %v59
  %62 = vset.pattern.permute.xlu0 2
  %63 = vperm.xlu0 %62, %v27
  %v64 = vpop.permute.xlu0 %63
  %66 = vset.pattern.permute.xlu0 2
  %67 = vperm.xlu0 %66, %v28
  %v68 = vpop.permute.xlu0 %67
  %v70 = vlaneseq
  %v71 = vshrl.u32 %v70, 7
  %v72 = vsub.s32 2, %v71
  %v73 = vrot.slane %v29, %v72
  %v74 = vmul.f32 %v64, %v73
  %v75 = vmul.f32 %v68, %v73
  %v76 = vadd.f32 %v60, %v74
  %v77 = vadd.f32 %v61, %v75
  %v78 = vld [vmem:[%s2] sm:$0x1]
  %v80 = vlaneseq
  %v81 = vshrl.u32 %v80, 7
  %v82 = vsub.s32 0, %v81
  %v83 = vrot.slane %v78, %v82
  %v85 = vadd.f32 %v76, %v83
  %v86 = vadd.f32 %v77, %v83
  %v87 = vmax.f32 %v85, 0.0
  %v88 = vmax.f32 %v86, 0.0
  %v89 = vpack.c.bf16 %v88, %v87
  %v90 = vld [vmem:[%s3] sm:$0xf]
  %v91 = vld [vmem:[%s3 + $0x4] sm:$0xf]
  %v92 = vld [vmem:[%s3 + $0x8] sm:$0xf]
  %v93 = vld [vmem:[%s3 + $0xc] sm:$0xf]
  %v94 = vld [vmem:[%s3 + $0x10] sm:$0xf]
  %v95 = vld [vmem:[%s3 + $0x14] sm:$0xf]
  %v96 = vld [vmem:[%s3 + $0x18] sm:$0xf]
  %v97 = vld [vmem:[%s3 + $0x1c] sm:$0xf]
  %v98 = vld [vmem:[%s3 + $0x20] sm:$0xf]
  %v99 = vld [vmem:[%s3 + $0x24] sm:$0xf]
  %v100 = vld [vmem:[%s3 + $0x28] sm:$0xf]
  %v101 = vld [vmem:[%s3 + $0x2c] sm:$0xf]
  %v102 = vld [vmem:[%s3 + $0x30] sm:$0xf]
  %v103 = vld [vmem:[%s3 + $0x34] sm:$0xf]
  %v104 = vld [vmem:[%s3 + $0x38] sm:$0xf]
  %v105 = vld [vmem:[%s3 + $0x3c] sm:$0xf]
  %v106 = vld [vmem:[%s4] sm:$0x1]
  %v108 = vlaneseq
  %v109 = vshrl.u32 %v108, 7
  %v110 = vsub.s32 0, %v109
  %v111 = vrot.slane %v106, %v110
  %v129 = vunpack.c.l.b16 %v90
  %v130 = vunpack.c.l.b16 %v91
  %v131 = vunpack.c.l.b16 %v92
  %v132 = vunpack.c.l.b16 %v93
  %v133 = vunpack.c.l.b16 %v94
  %v134 = vunpack.c.l.b16 %v95
  %v135 = vunpack.c.l.b16 %v96
  %v136 = vunpack.c.l.b16 %v97
  %v137 = vunpack.c.l.b16 %v98
  %v138 = vunpack.c.l.b16 %v99
  %v139 = vunpack.c.l.b16 %v100
  %v140 = vunpack.c.l.b16 %v101
  %v141 = vunpack.c.l.b16 %v102
  %v142 = vunpack.c.l.b16 %v103
  %v143 = vunpack.c.l.b16 %v104
  %v144 = vunpack.c.l.b16 %v105
  %v145 = vpack.c.b16 %v130, %v129
  %v146 = vpack.c.b16 %v132, %v131
  %v147 = vpack.c.b16 %v134, %v133
  %v148 = vpack.c.b16 %v136, %v135
  %v149 = vpack.c.b16 %v138, %v137
  %v150 = vpack.c.b16 %v140, %v139
  %v151 = vpack.c.b16 %v142, %v141
  %v152 = vpack.c.b16 %v144, %v143
  %161 = vmatprep.subr.bf16.mxu0 0
  %162 = vmatpush1.bf16.msra.mxu0 %v152
  %163 = vmatprep.subr.bf16.mxu0 0
  %164 = vmatpush1.bf16.msra.mxu0 %v151
  %165 = vmatprep.subr.bf16.mxu0 0
  %166 = vmatpush1.bf16.msra.mxu0 %v150
  %167 = vmatprep.subr.bf16.mxu0 0
  %168 = vmatpush1.bf16.msra.mxu0 %v149
  %169 = vmatprep.subr.bf16.mxu0 0
  %170 = vmatpush1.bf16.msra.mxu0 %v148
  %171 = vmatprep.subr.bf16.mxu0 0
  %172 = vmatpush1.bf16.msra.mxu0 %v147
  %173 = vmatprep.subr.bf16.mxu0 0
  %174 = vmatpush1.bf16.msra.mxu0 %v146
  %175 = vmatprep.subr.bf16.mxu0 0
  %176 = vmatpush1.bf16.msra.mxu0 %v145
  %177 = vmatprep.subr.bf16.mxu0 0
  %178 = vmatpush2.bf16.msra.mxu0 0
  %179 = vmatprep.subr.bf16.mxu0 0
  %180 = vmatpush2.bf16.msra.mxu0 0
  %181 = vmatprep.subr.bf16.mxu0 0
  %182 = vmatpush2.bf16.msra.mxu0 0
  %183 = vmatprep.subr.bf16.mxu0 0
  %184 = vmatpush2.bf16.msra.mxu0 0
  %185 = vmatprep.subr.bf16.mxu0 0
  %186 = vmatpush2.bf16.msra.mxu0 0
  %187 = vmatprep.subr.bf16.mxu0 0
  %188 = vmatpush2.bf16.msra.mxu0 0
  %189 = vmatprep.subr.bf16.mxu0 0
  %190 = vmatpush2.bf16.msra.mxu0 0
  %191 = vmatprep.subr.bf16.mxu0 0
  %192 = vmatpush2.bf16.msra.mxu0 0
  %193 = vmatprep.mubr.bf16.mxu0 0
  %194 = vmatmul.mubr.bf16.gmra.mxu0 %v89
  %v195 = vpop.f32.mrf.mxu0
  %v196 = vadd.f32 %v111, %v195
  %v197 = vpop.f32.mrf.mxu0
  %v198 = vpop.f32.mrf.mxu0
  %v199 = vadd.f32 %v111, %v198
  %v200 = vpop.f32.mrf.mxu0
  %201 = vdwg.mxu0
  %v202 = vmax.f32 %v196, 0.0
  %v203 = vmax.f32 %v199, 0.0
  %v204 = vpack.c.bf16 %v203, %v202
  %v205 = vld [vmem:[%s5] sm:$0xf]
  %v206 = vld [vmem:[%s5 + $0x4] sm:$0xf]
  %v207 = vld [vmem:[%s5 + $0x8] sm:$0xf]
  %v208 = vld [vmem:[%s5 + $0xc] sm:$0xf]
  %v209 = vld [vmem:[%s5 + $0x10] sm:$0xf]
  %v210 = vld [vmem:[%s5 + $0x14] sm:$0xf]
  %v211 = vld [vmem:[%s5 + $0x18] sm:$0xf]
  %v212 = vld [vmem:[%s5 + $0x1c] sm:$0xf]
  %v213 = vld [vmem:[%s5 + $0x20] sm:$0xf]
  %v214 = vld [vmem:[%s5 + $0x24] sm:$0xf]
  %v215 = vld [vmem:[%s5 + $0x28] sm:$0xf]
  %v216 = vld [vmem:[%s5 + $0x2c] sm:$0xf]
  %v217 = vld [vmem:[%s5 + $0x30] sm:$0xf]
  %v218 = vld [vmem:[%s5 + $0x34] sm:$0xf]
  %v219 = vld [vmem:[%s5 + $0x38] sm:$0xf]
  %v220 = vld [vmem:[%s5 + $0x3c] sm:$0xf]
  %v221 = vld [vmem:[%s6] sm:$0x1]
  %v223 = vlaneseq
  %v224 = vshrl.u32 %v223, 7
  %v225 = vsub.s32 0, %v224
  %v226 = vrot.slane %v221, %v225
  %v244 = vunpack.c.l.b16 %v205
  %v245 = vunpack.c.l.b16 %v206
  %v246 = vunpack.c.l.b16 %v207
  %v247 = vunpack.c.l.b16 %v208
  %v248 = vunpack.c.l.b16 %v209
  %v249 = vunpack.c.l.b16 %v210
  %v250 = vunpack.c.l.b16 %v211
  %v251 = vunpack.c.l.b16 %v212
  %v252 = vunpack.c.l.b16 %v213
  %v253 = vunpack.c.l.b16 %v214
  %v254 = vunpack.c.l.b16 %v215
  %v255 = vunpack.c.l.b16 %v216
  %v256 = vunpack.c.l.b16 %v217
  %v257 = vunpack.c.l.b16 %v218
  %v258 = vunpack.c.l.b16 %v219
  %v259 = vunpack.c.l.b16 %v220
  %v260 = vpack.c.b16 %v245, %v244
  %v261 = vpack.c.b16 %v247, %v246
  %v262 = vpack.c.b16 %v249, %v248
  %v263 = vpack.c.b16 %v251, %v250
  %v264 = vpack.c.b16 %v253, %v252
  %v265 = vpack.c.b16 %v255, %v254
  %v266 = vpack.c.b16 %v257, %v256
  %v267 = vpack.c.b16 %v259, %v258
  %276 = vmatprep.subr.bf16.mxu0 0
  %277 = vmatpush1.bf16.msra.mxu0 %v267
  %278 = vmatprep.subr.bf16.mxu0 0
  %279 = vmatpush1.bf16.msra.mxu0 %v266
  %280 = vmatprep.subr.bf16.mxu0 0
  %281 = vmatpush1.bf16.msra.mxu0 %v265
  %282 = vmatprep.subr.bf16.mxu0 0
  %283 = vmatpush1.bf16.msra.mxu0 %v264
  %284 = vmatprep.subr.bf16.mxu0 0
  %285 = vmatpush1.bf16.msra.mxu0 %v263
  %286 = vmatprep.subr.bf16.mxu0 0
  %287 = vmatpush1.bf16.msra.mxu0 %v262
  %288 = vmatprep.subr.bf16.mxu0 0
  %289 = vmatpush1.bf16.msra.mxu0 %v261
  %290 = vmatprep.subr.bf16.mxu0 0
  %291 = vmatpush1.bf16.msra.mxu0 %v260
  %292 = vmatprep.subr.bf16.mxu0 0
  %293 = vmatpush2.bf16.msra.mxu0 0
  %294 = vmatprep.subr.bf16.mxu0 0
  %295 = vmatpush2.bf16.msra.mxu0 0
  %296 = vmatprep.subr.bf16.mxu0 0
  %297 = vmatpush2.bf16.msra.mxu0 0
  %298 = vmatprep.subr.bf16.mxu0 0
  %299 = vmatpush2.bf16.msra.mxu0 0
  %300 = vmatprep.subr.bf16.mxu0 0
  %301 = vmatpush2.bf16.msra.mxu0 0
  %302 = vmatprep.subr.bf16.mxu0 0
  %303 = vmatpush2.bf16.msra.mxu0 0
  %304 = vmatprep.subr.bf16.mxu0 0
  %305 = vmatpush2.bf16.msra.mxu0 0
  %306 = vmatprep.subr.bf16.mxu0 0
  %307 = vmatpush2.bf16.msra.mxu0 0
  %308 = vmatprep.mubr.bf16.mxu0 0
  %309 = vmatmul.mubr.bf16.gmra.mxu0 %v204
  %v310 = vpop.f32.mrf.mxu0
  %v311 = vadd.f32 %v226, %v310
  %v312 = vpop.f32.mrf.mxu0
  %v313 = vpop.f32.mrf.mxu0
  %v314 = vadd.f32 %v226, %v313
  %v315 = vpop.f32.mrf.mxu0
  %316 = vdwg.mxu0
  %vm317 = vcmask 23552
  %318 = vst.msk [vmem:[%s7] sm:$0xff] %vm317, %v311
  %319 = vst.msk [vmem:[%s7 + $0x8] sm:$0xff] %vm317, %v314
  // Predicated region
  $region30: #{mlp_forward.1} parent=0 // pred_check
    _
  $region31: #{mlp_forward.1} parent=0 // pred_check_branch
    %321 = sbr.rel (0) target = $region33
  $region32: #{mlp_forward.1} parent=0 // pred_region
    _
  $region33: #{mlp_forward.1} parent=0 // pred_fallthru
    _
  // Predicated region
  $region34: #{mlp_forward.1} parent=0 // pred_check
    _
  $region35: #{mlp_forward.1} parent=0 // pred_check_branch
    %323 = sbr.rel (0) target = $region37
  $region36: #{mlp_forward.1} parent=0 // pred_region
    _
  $region37: #{mlp_forward.1} parent=0 // pred_fallthru
    _

</llo_original>
